<compile_context>
chip_gen: v7x
topology: tpu7x:2x2x1
jax: 0.10.0
libtpu: 0.0.40
codegen_flags: <defaults>
</compile_context>

<pallas_src>
import functools

import jax
import jax.numpy as jnp
from jax.experimental import pallas as pl
from jax.experimental.pallas import tpu as pltpu


def mlp_kernel(x_ref, w1_ref, b1_ref, w2_ref, b2_ref, o_ref):
    # Cast x to the MXU dtype in-kernel (no wrapper pass over x).
    x = x_ref[...].astype(w1_ref.dtype)
    # First linear: x @ W1  (MXU, bf16 inputs, f32 accumulate)
    h = jnp.dot(x, w1_ref[...], preferred_element_type=jnp.float32)
    # Bias + ReLU in f32 on the VPU (rides under the MXU work on all generations).
    h = jnp.maximum(h + b1_ref[...], 0.0)
    # Second linear: h @ W2
    out = jnp.dot(h.astype(w2_ref.dtype), w2_ref[...],
                  preferred_element_type=jnp.float32)
    out = out + b2_ref[...]
    o_ref[...] = out.astype(o_ref.dtype)


def _round_up(n, m):
    return ((n + m - 1) // m) * m


def _cdiv(a, b):
    return -(-a // b)


def _choose_batch_tile(B, block_b):
    """Pick (TB, grid) so TB is a multiple of 16 (bf16 row packing), there is no
    wasted near-empty tail tile, and (when B is large) the number of grid steps is
    an even number >= 2 so v7x's two TensorCores both get work."""
    block_b = max(16, _round_up(block_b, 16))          # guard user-supplied block_b
    n_tiles = _cdiv(B, block_b)
    # Split a single big tile in two for v7x megacore only when B is large enough
    # that the extra ~0.35us grid-step overhead is negligible (no-op on v5e/v6e).
    if n_tiles == 1 and B >= 256:
        n_tiles = 2
    if n_tiles > 1 and n_tiles % 2 == 1:
        n_tiles += 1
    if n_tiles == 1:
        return B, 1                                    # single full-dim block (always legal)
    TB = _round_up(_cdiv(B, n_tiles), 16)
    return TB, _cdiv(B, TB)


def prepare_classify_head_params(w1, b1, w2, b2, compute_dtype=jnp.bfloat16):
    """One-time parameter prep (do NOT call per forward): cast weights to the MXU
    dtype and reshape biases to (1, H)/(1, C) f32 rows. Weights are stored as
    [in, out] (PyTorch W.T) so the kernel computes x @ W + b."""
    return (w1.astype(compute_dtype),
            b1.astype(jnp.float32).reshape(1, -1),
            w2.astype(compute_dtype),
            b2.astype(jnp.float32).reshape(1, -1))


@functools.partial(jax.jit, static_argnames=("block_b",))
def classify_head_forward(x, w1, b1, w2, b2, *, block_b=1024):
    """Fused MLP head.
       x : (B, in_dim) any float dtype;
       w1 : (in_dim, hidden) compute dtype; b1 : (1, hidden) f32;
       w2 : (hidden, num_classes) compute dtype; b2 : (1, num_classes) f32.
       (w*/b* as produced by prepare_classify_head_params.)
       Returns (B, num_classes) in x.dtype."""
    B, D = x.shape
    H = w1.shape[1]
    C = w2.shape[1]
    out_dtype = x.dtype

    TB, n_steps = _choose_batch_tile(B, block_b)

    return pl.pallas_call(
        mlp_kernel,
        out_shape=jax.ShapeDtypeStruct((B, C), out_dtype),
        grid=(n_steps,),
        in_specs=[
            # x tile streams over batch; last dim == full D (no lane padding needed).
            pl.BlockSpec((TB, D), lambda i: (i, 0)),
            # Weights / biases: full-array blocks, VMEM-resident across grid steps.
            pl.BlockSpec((D, H), lambda i: (0, 0)),
            pl.BlockSpec((1, H), lambda i: (0, 0)),
            pl.BlockSpec((H, C), lambda i: (0, 0)),
            pl.BlockSpec((1, C), lambda i: (0, 0)),
        ],
        # Unpadded output block; last dim == full C (masked vst, but 8x fewer bytes).
        out_specs=pl.BlockSpec((TB, C), lambda i: (i, 0)),
        compiler_params=pltpu.CompilerParams(
            # Batch tiles are independent -> shard across TCs on v7x.
            dimension_semantics=("parallel",)),
    )(x, w1, b1, w2, b2)


def _reference(x, w1, b1, w2, b2):
    return jnp.maximum(x @ w1 + b1, 0.0) @ w2 + b2


if __name__ == "__main__":
    # args.in_dim=32, args.hidden_dims=64, args.num_classes=16, batch=8
    B, IN_DIM, HIDDEN, NUM_CLASSES = 8, 32, 64, 16

    key = jax.random.PRNGKey(0)
    k_x, k_w1, k_b1, k_w2, k_b2, k_x2 = jax.random.split(key, 6)

    x = jax.random.normal(k_x, (B, IN_DIM), dtype=jnp.float32)
    # PyTorch Linear stores W as (out, in); we store W.T = (in, out).
    w1 = jax.random.normal(k_w1, (IN_DIM, HIDDEN), dtype=jnp.float32) * 0.1
    b1 = jax.random.normal(k_b1, (HIDDEN,), dtype=jnp.float32) * 0.1
    w2 = jax.random.normal(k_w2, (HIDDEN, NUM_CLASSES), dtype=jnp.float32) * 0.1
    b2 = jax.random.normal(k_b2, (NUM_CLASSES,), dtype=jnp.float32) * 0.1

    # One-time parameter prep (cast + bias reshape), hoisted out of the forward.
    w1_p, b1_p, w2_p, b2_p = prepare_classify_head_params(w1, b1, w2, b2)

    # Small (single-tile) case.
    out = classify_head_forward(x, w1_p, b1_p, w2_p, b2_p)
    out = jax.block_until_ready(out)
    ref = _reference(x, w1, b1, w2, b2)
    assert out.shape == (B, NUM_CLASSES)
    # bf16 matmul inputs -> tolerance loosened vs pure-f32 reference.
    assert jnp.allclose(out, ref, atol=3e-2, rtol=3e-2), "mismatch vs reference (small)"

    # Larger, ragged batch to exercise multi-tile grid + partial last block.
    B2 = 300
    x2 = jax.random.normal(k_x2, (B2, IN_DIM), dtype=jnp.float32)
    out2 = classify_head_forward(x2, w1_p, b1_p, w2_p, b2_p, block_b=128)
    out2 = jax.block_until_ready(out2)
    ref2 = _reference(x2, w1, b1, w2, b2)
    assert out2.shape == (B2, NUM_CLASSES)
    assert jnp.allclose(out2, ref2, atol=3e-2, rtol=3e-2), "mismatch vs reference (tiled)"

    print("KERNEL_OK")
</pallas_src>

<mosaic_0001>
module attributes {stable_mosaic.version = 11 : i64} {
  func.func @mlp_kernel(%arg0: i32, %arg1: memref<8x32xf32, #tpu.memory_space<vmem>>, %arg2: memref<32x64xbf16, #tpu.memory_space<vmem>>, %arg3: memref<1x64xf32, #tpu.memory_space<vmem>>, %arg4: memref<64x16xbf16, #tpu.memory_space<vmem>>, %arg5: memref<1x16xf32, #tpu.memory_space<vmem>>, %arg6: memref<8x16xf32, #tpu.memory_space<vmem>>) attributes {dimension_semantics = [#tpu.dimension_semantics<parallel>], iteration_bounds = array<i64: 1>, scalar_prefetch = 0 : i64, scratch_operands = 0 : i64, tpu.core_type = #tpu.core_type<tc>, window_params = [{transform_indices = @transform_0, window_bounds = array<i64: 8, 32>}, {pipeline_mode = #tpu.pipeline_mode<synchronous>, transform_indices = @transform_1, window_bounds = array<i64: 32, 64>}, {pipeline_mode = #tpu.pipeline_mode<synchronous>, transform_indices = @transform_2, window_bounds = array<i64: 1, 64>}, {pipeline_mode = #tpu.pipeline_mode<synchronous>, transform_indices = @transform_3, window_bounds = array<i64: 64, 16>}, {pipeline_mode = #tpu.pipeline_mode<synchronous>, transform_indices = @transform_4, window_bounds = array<i64: 1, 16>}, {transform_indices = @transform_5, window_bounds = array<i64: 8, 16>}]} {
    %c0 = arith.constant 0 : index
    %c0_0 = arith.constant 0 : index
    %0 = vector.load %arg1[%c0, %c0_0] : memref<8x32xf32, #tpu.memory_space<vmem>>, vector<8x32xf32>
    %1 = arith.truncf %0 : vector<8x32xf32> to vector<8x32xbf16>
    %c0_1 = arith.constant 0 : index
    %c0_2 = arith.constant 0 : index
    %2 = vector.load %arg2[%c0_1, %c0_2] : memref<32x64xbf16, #tpu.memory_space<vmem>>, vector<32x64xbf16>
    %cst = arith.constant dense<0.000000e+00> : vector<8x64xf32>
    %3 = tpu.matmul %1, %2, %cst {dimension_numbers = #tpu.dot_dimension_numbers<[1], [0], [0], [1], [0, 0, 1, 1], [], []>} : vector<8x32xbf16>, vector<32x64xbf16>, vector<8x64xf32> -> vector<8x64xf32>
    %c0_3 = arith.constant 0 : index
    %c0_4 = arith.constant 0 : index
    %4 = vector.load %arg3[%c0_3, %c0_4] : memref<1x64xf32, #tpu.memory_space<vmem>>, vector<1x64xf32>
    %5 = vector.broadcast %4 : vector<1x64xf32> to vector<8x64xf32>
    %6 = arith.addf %3, %5 : vector<8x64xf32>
    %cst_5 = arith.constant 0.000000e+00 : f32
    %7 = vector.broadcast %cst_5 : f32 to vector<8x64xf32>
    %8 = arith.maximumf %6, %7 : vector<8x64xf32>
    %9 = arith.truncf %8 : vector<8x64xf32> to vector<8x64xbf16>
    %c0_6 = arith.constant 0 : index
    %c0_7 = arith.constant 0 : index
    %10 = vector.load %arg4[%c0_6, %c0_7] : memref<64x16xbf16, #tpu.memory_space<vmem>>, vector<64x16xbf16>
    %cst_8 = arith.constant dense<0.000000e+00> : vector<8x16xf32>
    %11 = tpu.matmul %9, %10, %cst_8 {dimension_numbers = #tpu.dot_dimension_numbers<[1], [0], [0], [1], [0, 0, 1, 1], [], []>} : vector<8x64xbf16>, vector<64x16xbf16>, vector<8x16xf32> -> vector<8x16xf32>
    %c0_9 = arith.constant 0 : index
    %c0_10 = arith.constant 0 : index
    %12 = vector.load %arg5[%c0_9, %c0_10] : memref<1x16xf32, #tpu.memory_space<vmem>>, vector<1x16xf32>
    %13 = vector.broadcast %12 : vector<1x16xf32> to vector<8x16xf32>
    %14 = arith.addf %11, %13 : vector<8x16xf32>
    %c0_11 = arith.constant 0 : index
    %c0_12 = arith.constant 0 : index
    %15 = vector.load %arg6[%c0_11, %c0_12] : memref<8x16xf32, #tpu.memory_space<vmem>>, vector<8x16xf32>
    tpu.vector_store %arg6[%c0_11, %c0_12], %14 {strides = array<i32>} : memref<8x16xf32, #tpu.memory_space<vmem>>, vector<8x16xf32>,
    return
  }
  func.func @transform_0(%arg0: i32) -> (i32, i32) {
    %c0_i32 = arith.constant 0 : i32
    %c0_i32_0 = arith.constant 0 : i32
    return %arg0, %c0_i32 : i32, i32
  }
  func.func @transform_1(%arg0: i32) -> (i32, i32) {
    %c0_i32 = arith.constant 0 : i32
    %c0_i32_0 = arith.constant 0 : i32
    %c0_i32_1 = arith.constant 0 : i32
    return %c0_i32, %c0_i32_0 : i32, i32
  }
  func.func @transform_2(%arg0: i32) -> (i32, i32) {
    %c0_i32 = arith.constant 0 : i32
    %c0_i32_0 = arith.constant 0 : i32
    %c0_i32_1 = arith.constant 0 : i32
    return %c0_i32, %c0_i32_0 : i32, i32
  }
  func.func @transform_3(%arg0: i32) -> (i32, i32) {
    %c0_i32 = arith.constant 0 : i32
    %c0_i32_0 = arith.constant 0 : i32
    %c0_i32_1 = arith.constant 0 : i32
    return %c0_i32, %c0_i32_0 : i32, i32
  }
  func.func @transform_4(%arg0: i32) -> (i32, i32) {
    %c0_i32 = arith.constant 0 : i32
    %c0_i32_0 = arith.constant 0 : i32
    %c0_i32_1 = arith.constant 0 : i32
    return %c0_i32, %c0_i32_0 : i32, i32
  }
  func.func @transform_5(%arg0: i32) -> (i32, i32) {
    %c0_i32 = arith.constant 0 : i32
    %c0_i32_0 = arith.constant 0 : i32
    return %arg0, %c0_i32 : i32, i32
  }
}

</mosaic_0001>

<llo_original>
// kernel: classify_head_forward.1
$region0: #{classify_head_forward.1}
  #allocation0 [shape = 'u32[]', space=smem, size = 0x4, offset = 0x4, fixed_abs, tag = 'smem constant byte address 0x4 - core index']
  #allocation1 [shape = 'u32[144,128]{1,0:T(1,128)}', space=vmem, size = 0x12000, scoped, tag = 'internal scratch']
  %s0 = inlined_call_operand.vmem [shape: f32[8,32], index: 0, kind: input, shape index: {}]
  %s1 = inlined_call_operand.vmem [shape: bf16[32,64], index: 1, kind: input, shape index: {}]
  %s2 = inlined_call_operand.vmem [shape: f32[1,64], index: 2, kind: input, shape index: {}]
  %s3 = inlined_call_operand.vmem [shape: bf16[64,16], index: 3, kind: input, shape index: {}]
  %s4 = inlined_call_operand.vmem [shape: f32[1,16], index: 4, kind: input, shape index: {}]
  %s5 = inlined_call_operand.hbm [shape: f32[8,16], index: 5, kind: output, shape index: {}]
  %s6 = sld [smem:[#allocation0]]
  $region30: #{classify_head_forward.1} parent=0
    _
  %s8 = ssub.s32 1, %s6
  %s9 = scalar_select 0, %s8, %s6
  $region1: #{classify_head_forward.1} parent=0
    #allocation2 [shape = 'u8[4096]{0}', space=vmem, size = 0x1000, scoped, tag = 'output window, operand 0, single buffered']
    #allocation3 [shape = 's32[1]{0}', space=sflag, size = 0x4, scoped, tag = 'scoped memory for classify_head_forward.1']
    %10 = vsyncpa [#allocation3], 0
    // Predicated region
    $region2: #{classify_head_forward.1} parent=1 // pred_check
      _
    $region3: #{classify_head_forward.1} parent=1 // pred_check_branch
      %12 = sbr.rel (0) target = $region5
    $region4: #{classify_head_forward.1} parent=1 // pred_region
      _
    $region5: #{classify_head_forward.1} parent=1 // pred_fallthru
      _
    // Predicated region
    $region6: #{classify_head_forward.1} parent=1 // pred_check
      _
    $region7: #{classify_head_forward.1} parent=1 // pred_check_branch
      %14 = sbr.rel (0) target = $region9
    $region8: #{classify_head_forward.1} parent=1 // pred_region
      _
    $region9: #{classify_head_forward.1} parent=1 // pred_fallthru
      _
    // Predicated region
    $region10: #{classify_head_forward.1} parent=1 // pred_check
      _
    $region11: #{classify_head_forward.1} parent=1 // pred_check_branch
      %16 = sbr.rel (0) target = $region13
    $region12: #{classify_head_forward.1} parent=1 // pred_region
      _
    $region13: #{classify_head_forward.1} parent=1 // pred_fallthru
      _
    // Predicated region
    $region14: #{classify_head_forward.1} parent=1 // pred_check
      _
    $region15: #{classify_head_forward.1} parent=1 // pred_check_branch
      %18 = sbr.rel (0) target = $region17
    $region16: #{classify_head_forward.1} parent=1 // pred_region
      _
    $region17: #{classify_head_forward.1} parent=1 // pred_fallthru
      _
    // Predicated region
    $region18: #{classify_head_forward.1} parent=1 // pred_check
      _
    $region19: #{classify_head_forward.1} parent=1 // pred_check_branch
      %20 = sbr.rel (0) target = $region21
    $region20: #{classify_head_forward.1} parent=1 // pred_region
      _
    $region21: #{classify_head_forward.1} parent=1 // pred_fallthru
      _
    %v22 = vld [vmem:[%s0] sm:$0xff]
    %v23 = vpack.c.bf16 %v22, %v22
    %v24 = vld [vmem:[%s1] sm:$0xf]
    %v25 = vld [vmem:[%s1 + $0x4] sm:$0xf]
    %v26 = vld [vmem:[%s1 + $0x8] sm:$0xf]
    %v27 = vld [vmem:[%s1 + $0xc] sm:$0xf]
    %v28 = vld [vmem:[%s2] sm:$0x1]
    %v30 = vlaneseq
    %v31 = vshrl.u32 %v30, 7
    %v32 = vsub.s32 0, %v31
    %v33 = vrot.slane %v28, %v32
    %v39 = vunpack.c.l.b16 %v24
    %v40 = vunpack.c.l.b16 %v25
    %v41 = vunpack.c.l.b16 %v26
    %v42 = vunpack.c.l.b16 %v27
    %v43 = vpack.c.b16 %v40, %v39
    %v44 = vpack.c.b16 %v42, %v41
    %vm47 = vcmask 261120
    %v49 = vsel %vm47, %v23, 0
    %51 = vmatprep.subr.bf16.mxu0 0
    %52 = vmatpush1.bf16.msra.mxu0 %v43
    %53 = vmatprep.subr.bf16.mxu0 0
    %54 = vmatpush1.bf16.msra.mxu0 %v44
    %55 = vmatprep.subr.bf16.mxu0 0
    %56 = vmatpush1.bf16.msra.mxu0 0
    %57 = vmatprep.subr.bf16.mxu0 0
    %58 = vmatpush1.bf16.msra.mxu0 0
    %59 = vmatprep.subr.bf16.mxu0 0
    %60 = vmatpush1.bf16.msra.mxu0 0
    %61 = vmatprep.subr.bf16.mxu0 0
    %62 = vmatpush1.bf16.msra.mxu0 0
    %63 = vmatprep.subr.bf16.mxu0 0
    %64 = vmatpush1.bf16.msra.mxu0 0
    %65 = vmatprep.subr.bf16.mxu0 0
    %66 = vmatpush1.bf16.msra.mxu0 0
    %67 = vmatprep.subr.bf16.mxu0 0
    %68 = vmatpush1.bf16.msra.mxu0 0
    %69 = vmatprep.subr.bf16.mxu0 0
    %70 = vmatpush1.bf16.msra.mxu0 0
    %71 = vmatprep.subr.bf16.mxu0 0
    %72 = vmatpush1.bf16.msra.mxu0 0
    %73 = vmatprep.subr.bf16.mxu0 0
    %74 = vmatpush1.bf16.msra.mxu0 0
    %75 = vmatprep.subr.bf16.mxu0 0
    %76 = vmatpush1.bf16.msra.mxu0 0
    %77 = vmatprep.subr.bf16.mxu0 0
    %78 = vmatpush1.bf16.msra.mxu0 0
    %79 = vmatprep.subr.bf16.mxu0 0
    %80 = vmatpush1.bf16.msra.mxu0 0
    %81 = vmatprep.subr.bf16.mxu0 0
    %82 = vmatpush1.bf16.msra.mxu0 0
    %83 = vmatprep.mubr.bf16.mxu0 0
    %84 = vmatmul.mubr.bf16.gmra.mrb[0].mxu0 %v49
    %v85 = vpop.f32.mrb[0].mxu0
    %v86 = vadd.f32 %v33, %v85
    %v87 = vpop.f32.mrb[0].mxu0
    %v88 = vpop.f32.mrb[0].mxu0
    %v89 = vpop.f32.mrb[0].mxu0
    %90 = vdwg.mxu0
    %v91 = vmax.f32 %v86, 0.0
    %v92 = vpack.c.bf16 %v91, %v91
    %v93 = vld [vmem:[%s3] sm:$0xf]
    %v94 = vld [vmem:[%s3 + $0x4] sm:$0xf]
    %v95 = vld [vmem:[%s3 + $0x8] sm:$0xf]
    %v96 = vld [vmem:[%s3 + $0xc] sm:$0xf]
    %v97 = vld [vmem:[%s3 + $0x10] sm:$0xf]
    %v98 = vld [vmem:[%s3 + $0x14] sm:$0xf]
    %v99 = vld [vmem:[%s3 + $0x18] sm:$0xf]
    %v100 = vld [vmem:[%s3 + $0x1c] sm:$0xf]
    %v101 = vld [vmem:[%s4] sm:$0x1]
    %v103 = vlaneseq
    %v104 = vshrl.u32 %v103, 7
    %v105 = vsub.s32 0, %v104
    %v106 = vrot.slane %v101, %v105
    %v116 = vunpack.c.l.b16 %v93
    %v117 = vunpack.c.l.b16 %v94
    %v118 = vunpack.c.l.b16 %v95
    %v119 = vunpack.c.l.b16 %v96
    %v120 = vunpack.c.l.b16 %v97
    %v121 = vunpack.c.l.b16 %v98
    %v122 = vunpack.c.l.b16 %v99
    %v123 = vunpack.c.l.b16 %v100
    %v124 = vpack.c.b16 %v117, %v116
    %v125 = vpack.c.b16 %v119, %v118
    %v126 = vpack.c.b16 %v121, %v120
    %v127 = vpack.c.b16 %v123, %v122
    %vm132 = vcmask 523264
    %v134 = vsel %vm132, %v92, 0
    %136 = vmatprep.subr.bf16.mxu0 0
    %137 = vmatpush1.bf16.msra.mxu0 %v124
    %138 = vmatprep.subr.bf16.mxu0 0
    %139 = vmatpush1.bf16.msra.mxu0 %v125
    %140 = vmatprep.subr.bf16.mxu0 0
    %141 = vmatpush1.bf16.msra.mxu0 %v126
    %142 = vmatprep.subr.bf16.mxu0 0
    %143 = vmatpush1.bf16.msra.mxu0 %v127
    %144 = vmatprep.subr.bf16.mxu0 0
    %145 = vmatpush1.bf16.msra.mxu0 0
    %146 = vmatprep.subr.bf16.mxu0 0
    %147 = vmatpush1.bf16.msra.mxu0 0
    %148 = vmatprep.subr.bf16.mxu0 0
    %149 = vmatpush1.bf16.msra.mxu0 0
    %150 = vmatprep.subr.bf16.mxu0 0
    %151 = vmatpush1.bf16.msra.mxu0 0
    %152 = vmatprep.subr.bf16.mxu0 0
    %153 = vmatpush1.bf16.msra.mxu0 0
    %154 = vmatprep.subr.bf16.mxu0 0
    %155 = vmatpush1.bf16.msra.mxu0 0
    %156 = vmatprep.subr.bf16.mxu0 0
    %157 = vmatpush1.bf16.msra.mxu0 0
    %158 = vmatprep.subr.bf16.mxu0 0
    %159 = vmatpush1.bf16.msra.mxu0 0
    %160 = vmatprep.subr.bf16.mxu0 0
    %161 = vmatpush1.bf16.msra.mxu0 0
    %162 = vmatprep.subr.bf16.mxu0 0
    %163 = vmatpush1.bf16.msra.mxu0 0
    %164 = vmatprep.subr.bf16.mxu0 0
    %165 = vmatpush1.bf16.msra.mxu0 0
    %166 = vmatprep.subr.bf16.mxu0 0
    %167 = vmatpush1.bf16.msra.mxu0 0
    %168 = vmatprep.mubr.bf16.mxu0 0
    %169 = vmatmul.mubr.bf16.gmra.mrb[0].mxu0 %v134
    %v170 = vpop.f32.mrb[0].mxu0
    %v171 = vadd.f32 %v106, %v170
    %v172 = vpop.f32.mrb[0].mxu0
    %v173 = vpop.f32.mrb[0].mxu0
    %v174 = vpop.f32.mrb[0].mxu0
    %175 = vdwg.mxu0
    %vm176 = vcmask 130048
    %177 = vst.msk [vmem:[#allocation2] sm:$0xff] %vm176, %v171
    // Predicated region
    $region22: #{classify_head_forward.1} parent=1 // pred_check
      _
    $region23: #{classify_head_forward.1} parent=1 // pred_check_branch
      %179 = sbr.rel (0) target = $region25
    $region24: #{classify_head_forward.1} parent=1 // pred_region
      %s181 = ssub.s32 128, 128
      %182 = vsyncadd [#allocation3], %s181
      %s184 = sshll.u32 [#allocation2], 4
      %s185 = int_to_ptr.vmem [resolvable:$true] %s184
      %187 = dma.vmem_to_hbm [thread:$0]  %s185, 128, %s5, [#allocation3]
    $region25: #{classify_head_forward.1} parent=1 // pred_fallthru
      _
    // Predicated region
    $region26: #{classify_head_forward.1} parent=1 // pred_check
      _
    $region27: #{classify_head_forward.1} parent=1 // pred_check_branch
      %189 = sbr.rel (0) target = $region29
    $region28: #{classify_head_forward.1} parent=1 // pred_region
      %190 = dma.done [#allocation3], 128
    $region29: #{classify_head_forward.1} parent=1 // pred_fallthru
      _
    %191 = vsyncpa [#allocation3], 1

</llo_original>
